<compile_context>
chip_gen: v5e
topology: v5e:2x2
jax: 0.10.0
libtpu: 0.0.40
codegen_flags: <defaults>
</compile_context>

<pallas_src>
import functools

import jax
import jax.numpy as jnp
from jax import lax
from jax.experimental import pallas as pl
from jax.experimental.pallas import tpu as pltpu


# Contract axis 1 of BOTH operands -> F . F^T without materializing F^T.
_FFT_DIMS = (((1,), (1,)), ((), ()))

_DEFAULT_TILE_BUDGET = 4 << 20     # bytes per (Mp, tk) tile; safe on every gen
_tile_budget = None                # lazily derived from the chip's VMEM


def _round_up(x, m):
    return ((x + m - 1) // m) * m


def _tile_budget_bytes():
    """Per-(Mp, tk)-tile byte budget, scaled to the chip's VMEM when known."""
    global _tile_budget
    if _tile_budget is None:
        try:
            cap = int(pltpu.get_tpu_info().vmem_capacity_bytes)
            # v5e/v6e (128 MiB) -> 8 MiB per tile, v7x (64 MiB) -> 4 MiB.
            _tile_budget = max(4 << 20, min(12 << 20, cap // 16))
        except Exception:
            _tile_budget = _DEFAULT_TILE_BUDGET
    return _tile_budget


def _k_tiling(mp, k, itemsize, budget):
    """Pick (Kp, tk): tk is a multiple of 128 dividing Kp, sized ~budget bytes."""
    kp0 = _round_up(k, 128)
    nb = kp0 // 128
    tgt = max(budget // (mp * 128 * itemsize), 1)     # blocks/tile from budget
    tgt = max(min(tgt, nb), min(4, nb))               # but keep >= 512 lanes
    # Prefer an exact divisor of the 128-aligned K: avoids padding K further
    # (jnp.pad would materialize a full second copy of F in HBM).
    best = 1
    d = 1
    while d * d <= nb:
        if nb % d == 0:
            for c in (d, nb // d):
                if c <= tgt and c > best:
                    best = c
        d += 1
    if best * 128 >= 512 or best == nb:
        return kp0, best * 128
    # No usable divisor (near-prime block count): equal ceil-sized tiles with
    # less than one tile of K padding -- still far better than 128-wide tiles.
    nsteps = -(-nb // tgt)
    tb = -(-nb // nsteps)
    return nsteps * tb * 128, tb * 128


def _flatten_nchw(x):
    n, c, h, w = x.shape
    return x.reshape(n * c, h * w)


def _pad_features(f):
    """Pad (M, K) -> aligned (Mp, Kp); return padded F and the K tile width."""
    m, k = f.shape
    mp = _round_up(m, 8)
    kp, tk = _k_tiling(mp, k, f.dtype.itemsize, _tile_budget_bytes())
    if (mp, kp) != (m, k):
        f = jnp.pad(f, ((0, mp - m), (0, kp - k)))
    return f, tk


def _vmem_limit(*buffer_bytes):
    """Explicit scoped-VMEM limit: actual need + headroom, valid on all gens."""
    need = sum(buffer_bytes)
    return int(min(max(need + (8 << 20), 32 << 20), 48 << 20))


# ---------------------------------------------------------------- kernels ---

def _gram_kernel(f_ref, g_ref, *, norm):
    """Accumulate F_k . F_k^T into the resident fp32 output; scale at the end."""
    k = pl.program_id(0)

    @pl.when(k == 0)
    def _():
        g_ref[...] = jnp.zeros_like(g_ref)

    f = f_ref[...]                      # native dtype; MXU accumulates in fp32
    g_ref[...] += lax.dot_general(f, f, _FFT_DIMS,
                                  preferred_element_type=jnp.float32)

    @pl.when(k == pl.num_programs(0) - 1)
    def _():
        g_ref[...] = g_ref[...] * jnp.float32(norm)


def _style_loss_kernel(f_ref, gt_hbm, loss_ref, acc_ref, gt_vmem, gt_sem, *,
                       norm, inv_count):
    """K-tiled Gram of the input + MSE vs the target Gram at the last step."""
    k = pl.program_id(0)

    @pl.when(k == 0)
    def _():
        acc_ref[...] = jnp.zeros_like(acc_ref)
        # Single-buffered target Gram: one manual DMA, overlapped with compute.
        pltpu.make_async_copy(gt_hbm, gt_vmem, gt_sem).start()

    f = f_ref[...]
    acc_ref[...] += lax.dot_general(f, f, _FFT_DIMS,
                                    preferred_element_type=jnp.float32)

    @pl.when(k == pl.num_programs(0) - 1)
    def _():
        pltpu.make_async_copy(gt_hbm, gt_vmem, gt_sem).wait()
        g = acc_ref[...] * jnp.float32(norm)
        diff = g - gt_vmem[...]
        # Zero-padded rows/cols are zero in BOTH Grams, so the padded-block sum
        # equals the original MxM sum; divide by the ORIGINAL element count to
        # match torch.nn.functional.mse_loss exactly.
        loss_ref[0, 0] = jnp.sum(diff * diff) * jnp.float32(inv_count)


# --------------------------------------------------------------- wrappers ---

def _gram_padded(f_pad, tk, norm):
    """Gram of a padded (Mp, Kp) feature matrix, K-tiled; output (Mp, Mp) f32."""
    mp, kp = f_pad.shape
    grid_k = kp // tk
    itemsize = f_pad.dtype.itemsize
    return pl.pallas_call(
        functools.partial(_gram_kernel, norm=norm),
        out_shape=jax.ShapeDtypeStruct((mp, mp), jnp.float32),
        grid_spec=pltpu.PrefetchScalarGridSpec(
            num_scalar_prefetch=0,
            grid=(grid_k,),
            in_specs=[pl.BlockSpec((mp, tk), lambda k: (0, k))],
            out_specs=pl.BlockSpec((mp, mp), lambda k: (0, 0)),
        ),
        compiler_params=pltpu.CompilerParams(
            dimension_semantics=("arbitrary",),
            vmem_limit_bytes=_vmem_limit(2 * mp * tk * itemsize,
                                         2 * mp * mp * 4)),
        cost_estimate=pl.CostEstimate(
            flops=2 * mp * mp * kp,
            transcendentals=0,
            bytes_accessed=mp * kp * itemsize + mp * mp * 4),
    )(f_pad)


@jax.jit
def _gram_matrix_impl(x):
    f = _flatten_nchw(x)
    m, k = f.shape
    f_pad, tk = _pad_features(f)
    g = _gram_padded(f_pad, tk, 1.0 / (m * k))
    return g[:m, :m]


def gram_matrix(x):
    """x: (N, C, H, W) -> Gram (N*C, N*C), normalized by N*C*H*W."""
    return _gram_matrix_impl(x)


@jax.jit
def _target_gram_padded(target_feature):
    f = _flatten_nchw(lax.stop_gradient(target_feature))
    m, k = f.shape
    f_pad, tk = _pad_features(f)
    return _gram_padded(f_pad, tk, 1.0 / (m * k))


@jax.jit
def _style_loss_impl(x, target_gram_pad):
    f = _flatten_nchw(x)
    m, k = f.shape
    f_pad, tk = _pad_features(f)
    mp, kp = f_pad.shape
    grid_k = kp // tk
    itemsize = f_pad.dtype.itemsize

    loss = pl.pallas_call(
        functools.partial(_style_loss_kernel,
                          norm=1.0 / (m * k),
                          inv_count=1.0 / (m * m)),
        out_shape=jax.ShapeDtypeStruct((1, 1), jnp.float32),
        grid_spec=pltpu.PrefetchScalarGridSpec(
            num_scalar_prefetch=0,
            grid=(grid_k,),
            in_specs=[
                pl.BlockSpec((mp, tk), lambda kk: (0, kk)),
                pl.BlockSpec(memory_space=pl.ANY),   # target Gram: no pipeline
            ],
            out_specs=pl.BlockSpec((1, 1), lambda kk: (0, 0)),
            scratch_shapes=[
                pltpu.VMEM((mp, mp), jnp.float32),   # fp32 Gram accumulator
                pltpu.VMEM((mp, mp), jnp.float32),   # target Gram (1 buffer)
                pltpu.SemaphoreType.DMA,             # target-copy semaphore
            ],
        ),
        compiler_params=pltpu.CompilerParams(
            dimension_semantics=("arbitrary",),
            vmem_limit_bytes=_vmem_limit(2 * mp * tk * itemsize,
                                         2 * mp * mp * 4)),
        cost_estimate=pl.CostEstimate(
            flops=2 * mp * mp * kp,
            transcendentals=0,
            bytes_accessed=mp * kp * itemsize + mp * mp * 4 + 4),
    )(f_pad, target_gram_pad)

    return loss[0, 0]


class StyleLoss:
    """Mirrors the PyTorch module: target Gram fixed at construction;
    __call__(input) stores the MSE loss in self.loss and returns input."""

    def __init__(self, target_feature):
        n, c = target_feature.shape[0], target_feature.shape[1]
        m = n * c
        self._target_pad = _target_gram_padded(target_feature)  # padded Gram
        self.target = self._target_pad[:m, :m]
        self.loss = None

    def __call__(self, x):
        self.loss = _style_loss_impl(x, self._target_pad)
        return x  # pass-through, like the PyTorch forward

    forward = __call__


# ------------------------------------------------------------------ main ----

def _gram_ref(x):
    n, c, h, w = x.shape
    f = x.reshape(n * c, h * w).astype(jnp.float32)
    return (f @ f.T) / (n * c * h * w)


if __name__ == "__main__":
    key = jax.random.PRNGKey(0)
    k_tgt, k_in, k_tgt2, k_in2 = jax.random.split(key, 4)

    # --- Test 1: small NCHW feature maps (single K step) --------------------
    target_feature = jax.random.normal(k_tgt, (2, 4, 16, 16), dtype=jnp.float32)
    x = jax.random.normal(k_in, (2, 4, 16, 16), dtype=jnp.float32)

    module = StyleLoss(target_feature)
    out = module(x)
    out = jax.block_until_ready(out)
    loss = jax.block_until_ready(module.loss)

    g_in_ref = _gram_ref(x)
    g_tgt_ref = _gram_ref(target_feature)
    loss_ref = jnp.mean((g_in_ref - g_tgt_ref) ** 2)

    assert out.shape == x.shape and jnp.allclose(out, x), "forward must return input"
    assert jnp.allclose(module.target, g_tgt_ref, rtol=1e-2, atol=1e-4)
    assert jnp.allclose(loss, loss_ref, rtol=1e-5, atol=1e-6), (loss, loss_ref)

    # --- Test 2: force a multi-step K reduction (exercise the accumulator ---
    # init/finalize and the cross-step target-Gram DMA) by shrinking the
    # per-tile byte budget before the (new-shape) retrace.
    _tile_budget = 16 * 1024  # -> tk = 512 lanes below, grid_k = 4

    target_feature2 = jax.random.normal(k_tgt2, (1, 8, 32, 64), dtype=jnp.float32)
    x2 = jax.random.normal(k_in2, (1, 8, 32, 64), dtype=jnp.float32)

    module2 = StyleLoss(target_feature2)
    out2 = jax.block_until_ready(module2(x2))
    loss2 = jax.block_until_ready(module2.loss)
    loss2_ref = jnp.mean((_gram_ref(x2) - _gram_ref(target_feature2)) ** 2)

    assert jnp.allclose(out2, x2), "forward must return input"
    assert jnp.allclose(loss2, loss2_ref, rtol=1e-5, atol=1e-6), (loss2, loss2_ref)

    print("KERNEL_OK")
</pallas_src>

<mosaic_0001>
module attributes {stable_mosaic.version = 11 : i64} {
  func.func @_gram_kernel(%arg0: i32, %arg1: memref<8x256xf32, #tpu.memory_space<vmem>>, %arg2: memref<8x8xf32, #tpu.memory_space<vmem>>) attributes {dimension_semantics = [#tpu.dimension_semantics<arbitrary>], iteration_bounds = array<i64: 1>, scalar_prefetch = 0 : i64, scratch_operands = 0 : i64, tpu.core_type = #tpu.core_type<tc>, window_params = [{transform_indices = @transform_0, window_bounds = array<i64: 8, 256>}, {pipeline_mode = #tpu.pipeline_mode<synchronous>, transform_indices = @transform_1, window_bounds = array<i64: 8, 8>}]} {
    %c0_i32 = arith.constant 0 : i32
    %0 = arith.cmpi eq, %arg0, %c0_i32 : i32
    %1 = arith.extui %0 : i1 to i32
    %c0_i32_0 = arith.constant 0 : i32
    %2 = arith.cmpi ne, %1, %c0_i32_0 : i32
    scf.if %2 {
      %cst_8 = arith.constant 0.000000e+00 : f32
      %11 = vector.broadcast %cst_8 : f32 to vector<8x8xf32>
      %c0_9 = arith.constant 0 : index
      %c0_10 = arith.constant 0 : index
      %12 = vector.load %arg2[%c0_9, %c0_10] : memref<8x8xf32, #tpu.memory_space<vmem>>, vector<8x8xf32>
      tpu.vector_store %arg2[%c0_9, %c0_10], %11 {strides = array<i32>} : memref<8x8xf32, #tpu.memory_space<vmem>>, vector<8x8xf32>,
    } else {
    }
    %c0 = arith.constant 0 : index
    %c0_1 = arith.constant 0 : index
    %3 = vector.load %arg1[%c0, %c0_1] : memref<8x256xf32, #tpu.memory_space<vmem>>, vector<8x256xf32>
    %c0_2 = arith.constant 0 : index
    %c0_3 = arith.constant 0 : index
    %4 = vector.load %arg2[%c0_2, %c0_3] : memref<8x8xf32, #tpu.memory_space<vmem>>, vector<8x8xf32>
    %cst = arith.constant dense<0.000000e+00> : vector<8x8xf32>
    %5 = tpu.matmul %3, %3, %cst {dimension_numbers = #tpu.dot_dimension_numbers<[1], [1], [0], [0], [0, 0, 1, 0], [], []>} : vector<8x256xf32>, vector<8x256xf32>, vector<8x8xf32> -> vector<8x8xf32>
    %6 = arith.addf %4, %5 : vector<8x8xf32>
    %c0_4 = arith.constant 0 : index
    %c0_5 = arith.constant 0 : index
    %7 = vector.load %arg2[%c0_4, %c0_5] : memref<8x8xf32, #tpu.memory_space<vmem>>, vector<8x8xf32>
    tpu.vector_store %arg2[%c0_4, %c0_5], %6 {strides = array<i32>} : memref<8x8xf32, #tpu.memory_space<vmem>>, vector<8x8xf32>,
    %c0_i32_6 = arith.constant 0 : i32
    %8 = arith.cmpi eq, %arg0, %c0_i32_6 : i32
    %9 = arith.extui %8 : i1 to i32
    %c0_i32_7 = arith.constant 0 : i32
    %10 = arith.cmpi ne, %9, %c0_i32_7 : i32
    scf.if %10 {
      %c0_8 = arith.constant 0 : index
      %c0_9 = arith.constant 0 : index
      %11 = vector.load %arg2[%c0_8, %c0_9] : memref<8x8xf32, #tpu.memory_space<vmem>>, vector<8x8xf32>
      %cst_10 = arith.constant 4.8828125E-4 : f32
      %12 = vector.broadcast %cst_10 : f32 to vector<8x8xf32>
      %13 = arith.mulf %11, %12 : vector<8x8xf32>
      %c0_11 = arith.constant 0 : index
      %c0_12 = arith.constant 0 : index
      %14 = vector.load %arg2[%c0_11, %c0_12] : memref<8x8xf32, #tpu.memory_space<vmem>>, vector<8x8xf32>
      tpu.vector_store %arg2[%c0_11, %c0_12], %13 {strides = array<i32>} : memref<8x8xf32, #tpu.memory_space<vmem>>, vector<8x8xf32>,
    } else {
    }
    return
  }
  func.func @transform_0(%arg0: i32) -> (i32, i32) {
    %c0_i32 = arith.constant 0 : i32
    %c0_i32_0 = arith.constant 0 : i32
    return %c0_i32, %arg0 : i32, i32
  }
  func.func @transform_1(%arg0: i32) -> (i32, i32) {
    %c0_i32 = arith.constant 0 : i32
    %c0_i32_0 = arith.constant 0 : i32
    %c0_i32_1 = arith.constant 0 : i32
    return %c0_i32, %c0_i32_0 : i32, i32
  }
}

</mosaic_0001>

<llo_original>
// kernel: _target_gram_padded.1
$region0: #{_target_gram_padded.1}
  #allocation0 [shape = 'u32[]', space=smem, size = 0x4, offset = 0x4, fixed_abs, tag = 'smem constant byte address 0x4 - core index']
  #allocation1 [shape = 'u32[72,128]{1,0:T(1,128)}', space=vmem, size = 0x9000, scoped, tag = 'internal scratch']
  %s0 = inlined_call_operand.vmem [shape: f32[8,256], index: 0, kind: input, shape index: {}]
  %s1 = inlined_call_operand.hbm [shape: f32[8,8], index: 1, kind: output, shape index: {}]
  %s2 = sld [smem:[#allocation0]]
  $region22: #{_target_gram_padded.1} parent=0
    _
  %s4 = ssub.s32 1, %s2
  %s5 = scalar_select 0, %s4, %s2
  $region1: #{_target_gram_padded.1} parent=0
    #allocation2 [shape = 'u8[4096]{0}', space=vmem, size = 0x1000, scoped, tag = 'output window, operand 0, single buffered']
    #allocation3 [shape = 's32[1]{0}', space=sflag, size = 0x4, scoped, tag = 'scoped memory for _target_gram_padded.1']
    %6 = vsyncpa [#allocation3], 0
    // Predicated region
    $region2: #{_target_gram_padded.1} parent=1 // pred_check
      _
    $region3: #{_target_gram_padded.1} parent=1 // pred_check_branch
      %8 = sbr.rel (0) target = $region5
    $region4: #{_target_gram_padded.1} parent=1 // pred_region
      _
    $region5: #{_target_gram_padded.1} parent=1 // pred_fallthru
      _
    %p9 = scmp.eq.s32.totalorder 0, 0
    // Predicated region
    $region6: #{_target_gram_padded.1} parent=1 // pred_check
      %p10 = pneg %p9
    $region7: #{_target_gram_padded.1} parent=1 // pred_check_branch
      %12 = sbr.rel (%p10) target = $region9
    $region8: #{_target_gram_padded.1} parent=1 // pred_region
      %vm13 = vcmask 64512
      %14 = vst.msk [vmem:[#allocation2] sm:$0xff] %vm13, 0.0
    $region9: #{_target_gram_padded.1} parent=1 // pred_fallthru
      _
    %v15 = vld [vmem:[%s0] sm:$0xff]
    %v16 = vld [vmem:[%s0 + $0x8] sm:$0xff]
    %v17 = vld [vmem:[#allocation2] sm:$0xff]
    %18 = vmatpush.xpose.msra.mxu0 0.0
    %19 = vmatpush.xpose.msra.mxu0 0.0
    %20 = vmatpush.xpose.msra.mxu0 0.0
    %21 = vmatpush.xpose.msra.mxu0 0.0
    %22 = vmatpush.xpose.msra.mxu0 0.0
    %23 = vmatpush.xpose.msra.mxu0 0.0
    %24 = vmatpush.xpose.msra.mxu0 0.0
    %25 = vmatpush.xpose.msra.mxu0 0.0
    %26 = vmatpush.xpose.msra.mxu0 0.0
    %27 = vmatpush.xpose.msra.mxu0 0.0
    %28 = vmatpush.xpose.msra.mxu0 0.0
    %29 = vmatpush.xpose.msra.mxu0 0.0
    %30 = vmatpush.xpose.msra.mxu0 0.0
    %31 = vmatpush.xpose.msra.mxu0 0.0
    %32 = vmatpush.xpose.msra.mxu0 0.0
    %33 = vmatpush.xpose.msra.mxu0 %v15
    %34 = vmatmul.f32.gmra.mxu0 %v15
    %v35 = vpop.f32.mrf.mxu0
    %v36 = vadd.f32 0.0, %v35
    %37 = vdwg.mxu0
    %38 = vmatpush.xpose.msra.mxu0 0.0
    %39 = vmatpush.xpose.msra.mxu0 0.0
    %40 = vmatpush.xpose.msra.mxu0 0.0
    %41 = vmatpush.xpose.msra.mxu0 0.0
    %42 = vmatpush.xpose.msra.mxu0 0.0
    %43 = vmatpush.xpose.msra.mxu0 0.0
    %44 = vmatpush.xpose.msra.mxu0 0.0
    %45 = vmatpush.xpose.msra.mxu0 0.0
    %46 = vmatpush.xpose.msra.mxu0 0.0
    %47 = vmatpush.xpose.msra.mxu0 0.0
    %48 = vmatpush.xpose.msra.mxu0 0.0
    %49 = vmatpush.xpose.msra.mxu0 0.0
    %50 = vmatpush.xpose.msra.mxu0 0.0
    %51 = vmatpush.xpose.msra.mxu0 0.0
    %52 = vmatpush.xpose.msra.mxu0 0.0
    %53 = vmatpush.xpose.msra.mxu0 %v16
    %54 = vmatmul.f32.gmra.mxu0 %v16
    %v55 = vpop.f32.mrf.mxu0
    %v56 = vadd.f32 %v36, %v55
    %57 = vdwg.mxu0
    %v58 = vadd.f32 %v17, %v56
    %vm59 = vcmask 64512
    %60 = vst.msk [vmem:[#allocation2] sm:$0xff] %vm59, %v58
    // Predicated region
    $region10: #{_target_gram_padded.1} parent=1 // pred_check
      %p61 = pneg %p9
    $region11: #{_target_gram_padded.1} parent=1 // pred_check_branch
      %63 = sbr.rel (%p61) target = $region13
    $region12: #{_target_gram_padded.1} parent=1 // pred_region
      %v64 = vld [vmem:[#allocation2] sm:$0xff]
      %v65 = vmul.f32 %v64, 0.00048828125
      %66 = vst.msk [vmem:[#allocation2] sm:$0xff] %vm59, %v65
    $region13: #{_target_gram_padded.1} parent=1 // pred_fallthru
      _
    // Predicated region
    $region14: #{_target_gram_padded.1} parent=1 // pred_check
      _
    $region15: #{_target_gram_padded.1} parent=1 // pred_check_branch
      %68 = sbr.rel (0) target = $region17
    $region16: #{_target_gram_padded.1} parent=1 // pred_region
      %70 = vsyncadd [#allocation3], 0
      %s72 = sshll.u32 [#allocation2], 4
      %s73 = int_to_ptr.vmem [resolvable:$true] %s72
      %s74 = sshll.u32 %s1, 4
      %s75 = int_to_ptr.hbm [resolvable:$true] %s74
      %77 = dma.vmem_to_hbm [thread:$0]  %s73, 128, %s75, [#allocation3]
    $region17: #{_target_gram_padded.1} parent=1 // pred_fallthru
      _
    // Predicated region
    $region18: #{_target_gram_padded.1} parent=1 // pred_check
      _
    $region19: #{_target_gram_padded.1} parent=1 // pred_check_branch
      %79 = sbr.rel (0) target = $region21
    $region20: #{_target_gram_padded.1} parent=1 // pred_region
      %81 = dma.done [#allocation3], 128
    $region21: #{_target_gram_padded.1} parent=1 // pred_fallthru
      _
    %82 = vsyncpa [#allocation3], 1

</llo_original>
